<compile_context>
chip_gen: v7x
topology: tpu7x:2x2x1
jax: 0.10.0
libtpu: 0.0.40
codegen_flags: <defaults>
</compile_context>

<pallas_src>
from collections import namedtuple

import jax
import jax.numpy as jnp
from jax.experimental import pallas as pl
from jax.experimental.pallas import tpu as pltpu

SphericalPointCloud = namedtuple("SphericalPointCloud", ["xyz", "feats", "anchors"])


# ----------------------------------------------------------------------------
# Pallas kernel: anchor max-pool (VPU max over leading axis) + linear head (MXU)
# ----------------------------------------------------------------------------
def _final_conv_kernel(w_ref, x_ref, o_ref):
    # w_ref: [c_out, c_in]        resident weight (same block every grid step)
    # x_ref: [na, c_in, tile_np]  one batch element, one lane-dense tile of points
    # o_ref: [c_out, tile_np]
    pooled = jnp.max(x_ref[...], axis=0)                 # [c_in, tile_np], VPU max
    o_ref[...] = jnp.dot(
        w_ref[...], pooled, preferred_element_type=jnp.float32
    ).astype(o_ref.dtype)


# ----------------------------------------------------------------------------
# Helpers: padded-VMEM-aware, generation-aware tile selection
# ----------------------------------------------------------------------------
def _round_up(x, m):
    return (x + m - 1) // m * m


def _sublane_multiple(dtype):
    # f32 -> 8, bf16 -> 16, int8/fp8 -> 32 (sub-32-bit packs along sublanes)
    return 8 * (4 // jnp.dtype(dtype).itemsize)


def _vmem_capacity_bytes():
    try:
        return int(pltpu.get_tpu_info().vmem_capacity_bytes)
    except Exception:
        return 64 * 1024 * 1024  # conservative (v7x physical VMEM per TC)


def _choose_tile_np(npts_padded, c_in, na, dtype, budget_bytes):
    # Largest lane-dense (multiple-of-128) tile that divides the padded point
    # count and keeps the DOUBLE-BUFFERED, Mosaic-padded feats block under budget.
    itemsize = jnp.dtype(dtype).itemsize
    c_pad = _round_up(c_in, _sublane_multiple(dtype))
    for t in (8192, 4096, 2048, 1024, 512, 256, 128):
        if npts_padded % t == 0 and 2 * na * c_pad * t * itemsize <= budget_bytes:
            return t
    return 128


# ----------------------------------------------------------------------------
# Wrapper: layout, padding, BlockSpecs, and layout fix-up to match PyTorch
# ----------------------------------------------------------------------------
def final_conv(x: SphericalPointCloud, W: jax.Array, *, tile_np=None,
               feats_layout="bcpa"):
    feats = x.feats
    if feats_layout == "bcpa":
        # Module-native layout [nb, c_in, np, na]; one transpose puts points on
        # lanes.  If the producer can emit [nb, na, c_in, np] directly, pass
        # feats_layout="bacp" and this transpose (an HBM round trip) vanishes.
        nb, c_in, npts, na = feats.shape
        feats_t = jnp.transpose(feats, (0, 3, 1, 2))      # [nb, na, c_in, np]
    elif feats_layout == "bacp":
        nb, na, c_in, npts = feats.shape
        feats_t = feats
    else:
        raise ValueError(f"unknown feats_layout {feats_layout!r}")

    c_out, c_in_w = W.shape
    assert c_in_w == c_in
    # Note: the PyTorch module leaves `feat` unbound when na == 1; here the max
    # over a size-1 anchor axis is an exact squeeze, so no special case needed.

    dtype = feats_t.dtype
    itemsize = jnp.dtype(dtype).itemsize
    sub = _sublane_multiple(dtype)

    vmem_capacity = _vmem_capacity_bytes()
    input_budget = vmem_capacity // 4          # double-buffered feats tiles

    npts_padded = _round_up(npts, 128)
    if tile_np is None:
        tile_np = _choose_tile_np(npts_padded, c_in, na, dtype, input_budget)
    assert tile_np % 128 == 0, "point tile must stay lane-dense (multiple of 128)"
    npts_padded = _round_up(npts, tile_np)
    n_tiles = npts_padded // tile_np

    if npts_padded != npts:
        # Pad the point axis; padded points produce garbage rows that are
        # sliced off the (tiny) output below -- the anchor max is per-point.
        feats_t = jnp.pad(
            feats_t, ((0, 0), (0, 0), (0, 0), (0, npts_padded - npts)))

    # Per-step VMEM footprint with Mosaic lane/sublane padding.
    in_block = na * _round_up(c_in, sub) * tile_np * itemsize
    out_block = _round_up(c_out, 8) * tile_np * 4
    w_block = (_round_up(c_out, _sublane_multiple(W.dtype))
               * _round_up(c_in, 128) * W.dtype.itemsize)
    est = 2 * in_block + 2 * out_block + 2 * w_block
    vmem_limit = int(min(vmem_capacity - 4 * 1024 * 1024,
                         max(32 * 1024 * 1024, 2 * est)))

    out_cnp = pl.pallas_call(
        _final_conv_kernel,
        out_shape=jax.ShapeDtypeStruct((nb, c_out, npts_padded), jnp.float32),
        grid=(nb, n_tiles),
        in_specs=[
            pl.BlockSpec((c_out, c_in), lambda b, p: (0, 0)),              # W (resident)
            pl.BlockSpec((None, na, c_in, tile_np),
                         lambda b, p: (b, 0, 0, p)),                       # feats tile
        ],
        out_specs=pl.BlockSpec((None, c_out, tile_np), lambda b, p: (b, 0, p)),
        compiler_params=pltpu.CompilerParams(
            dimension_semantics=("parallel", "parallel"),
            vmem_limit_bytes=vmem_limit),
    )(W, feats_t)

    if npts_padded != npts:
        out_cnp = out_cnp[:, :, :npts]

    # Tiny output: [nb, c_out, np] -> [nb, np, c_out] (PyTorch permute(0, 2, 1)).
    x_out = jnp.transpose(out_cnp, (0, 2, 1))
    return x_out, None


# ----------------------------------------------------------------------------
# Pure-JAX reference (matches the PyTorch module) for a sanity check
# ----------------------------------------------------------------------------
def _reference(feats, W):
    pooled = jnp.max(feats, axis=-1)                 # [nb, c_in, np]
    return jnp.einsum("bcp,oc->bpo", pooled, W)      # [nb, np, c_out]


if __name__ == "__main__":
    # Small, module-consistent shapes: params['dim_in']=32, mlp[-1]=40 classes.
    params = {"dim_in": 32, "mlp": [64, 40]}
    c_in, c_out = params["dim_in"], params["mlp"][-1]
    nb, npts, na = 2, 128, 12                        # batch, points, SO(3) anchors

    key = jax.random.PRNGKey(0)
    k_feat, k_xyz, k_anchor, k_w = jax.random.split(key, 4)

    feats = jax.random.normal(k_feat, (nb, c_in, npts, na), jnp.float32)
    xyz = jax.random.normal(k_xyz, (nb, 3, npts), jnp.float32)
    anchors = jax.random.normal(k_anchor, (na, 3, 3), jnp.float32)
    # nn.Linear(c_in, c_out, bias=False) weight: [c_out, c_in]
    bound = 1.0 / (c_in ** 0.5)
    W = jax.random.uniform(k_w, (c_out, c_in), jnp.float32, -bound, bound)

    x_in = SphericalPointCloud(xyz, feats, anchors)

    x_out, aux = jax.jit(final_conv)(x_in, W)
    jax.block_until_ready(x_out)

    assert x_out.shape == (nb, npts, c_out)
    assert aux is None
    ref = _reference(feats, W)
    assert jnp.allclose(x_out, ref, rtol=1e-4, atol=1e-4), "mismatch vs reference"

    # Multi-tile grid path (np tiled in 128-point blocks).
    feats2 = jax.random.normal(k_feat, (nb, c_in, 256, na), jnp.float32)
    x_in2 = SphericalPointCloud(
        jax.random.normal(k_xyz, (nb, 3, 256), jnp.float32), feats2, anchors)
    x_out2, _ = jax.jit(lambda xx, ww: final_conv(xx, ww, tile_np=128))(x_in2, W)
    jax.block_until_ready(x_out2)
    assert jnp.allclose(x_out2, _reference(feats2, W), rtol=1e-4, atol=1e-4), \
        "mismatch vs reference (tiled path)"

    # Padding path: npts not a multiple of 128 (padded in wrapper, pad sliced off).
    feats3 = jax.random.normal(k_feat, (nb, c_in, 200, na), jnp.float32)
    x_in3 = SphericalPointCloud(
        jax.random.normal(k_xyz, (nb, 3, 200), jnp.float32), feats3, anchors)
    x_out3, _ = jax.jit(final_conv)(x_in3, W)
    jax.block_until_ready(x_out3)
    assert x_out3.shape == (nb, 200, c_out)
    assert jnp.allclose(x_out3, _reference(feats3, W), rtol=1e-4, atol=1e-4), \
        "mismatch vs reference (padded path)"

    print("KERNEL_OK")
</pallas_src>

<mosaic_0001>
module attributes {stable_mosaic.version = 11 : i64} {
  func.func @_final_conv_kernel(%arg0: i32, %arg1: i32, %arg2: memref<40x32xf32, #tpu.memory_space<vmem>>, %arg3: memref<1x12x32x128xf32, #tpu.memory_space<vmem>>, %arg4: memref<1x40x128xf32, #tpu.memory_space<vmem>>) attributes {dimension_semantics = [#tpu.dimension_semantics<parallel>, #tpu.dimension_semantics<parallel>], iteration_bounds = array<i64: 2, 1>, scalar_prefetch = 0 : i64, scratch_operands = 0 : i64, tpu.core_type = #tpu.core_type<tc>, window_params = [{pipeline_mode = #tpu.pipeline_mode<synchronous>, transform_indices = @transform_0, window_bounds = array<i64: 40, 32>}, {transform_indices = @transform_1, window_bounds = array<i64: 1, 12, 32, 128>}, {transform_indices = @transform_2, window_bounds = array<i64: 1, 40, 128>}]} {
    %c0 = arith.constant 0 : index
    %c0_0 = arith.constant 0 : index
    %c0_1 = arith.constant 0 : index
    %c0_2 = arith.constant 0 : index
    %0 = vector.load %arg3[%c0, %c0_0, %c0_1, %c0_2] : memref<1x12x32x128xf32, #tpu.memory_space<vmem>>, vector<1x12x32x128xf32>
    %1 = vector.shape_cast %0 : vector<1x12x32x128xf32> to vector<12x32x128xf32>
    %cst = arith.constant dense<0xFF800000> : vector<32x128xf32>
    %2 = vector.multi_reduction <maximumf>, %1, %cst [0] : vector<12x32x128xf32> to vector<32x128xf32>
    %c0_3 = arith.constant 0 : index
    %c0_4 = arith.constant 0 : index
    %3 = vector.load %arg2[%c0_3, %c0_4] : memref<40x32xf32, #tpu.memory_space<vmem>>, vector<40x32xf32>
    %cst_5 = arith.constant dense<0.000000e+00> : vector<40x128xf32>
    %4 = tpu.matmul %3, %2, %cst_5 {dimension_numbers = #tpu.dot_dimension_numbers<[1], [0], [0], [1], [0, 0, 1, 1], [], []>} : vector<40x32xf32>, vector<32x128xf32>, vector<40x128xf32> -> vector<40x128xf32>
    %c0_6 = arith.constant 0 : index
    %c0_7 = arith.constant 0 : index
    %c0_8 = arith.constant 0 : index
    %5 = vector.load %arg4[%c0_6, %c0_7, %c0_8] : memref<1x40x128xf32, #tpu.memory_space<vmem>>, vector<1x40x128xf32>
    %6 = vector.shape_cast %5 : vector<1x40x128xf32> to vector<40x128xf32>
    %7 = vector.shape_cast %4 : vector<40x128xf32> to vector<1x40x128xf32>
    tpu.vector_store %arg4[%c0_6, %c0_7, %c0_8], %7 {strides = array<i32>} : memref<1x40x128xf32, #tpu.memory_space<vmem>>, vector<1x40x128xf32>,
    return
  }
  func.func @transform_0(%arg0: i32, %arg1: i32) -> (i32, i32) {
    %c0_i32 = arith.constant 0 : i32
    %c0_i32_0 = arith.constant 0 : i32
    %c0_i32_1 = arith.constant 0 : i32
    return %c0_i32, %c0_i32_0 : i32, i32
  }
  func.func @transform_1(%arg0: i32, %arg1: i32) -> (i32, i32, i32, i32) {
    %c0_i32 = arith.constant 0 : i32
    %c0_i32_0 = arith.constant 0 : i32
    %c0_i32_1 = arith.constant 0 : i32
    return %arg0, %c0_i32, %c0_i32_0, %arg1 : i32, i32, i32, i32
  }
  func.func @transform_2(%arg0: i32, %arg1: i32) -> (i32, i32, i32) {
    %c0_i32 = arith.constant 0 : i32
    %c0_i32_0 = arith.constant 0 : i32
    return %arg0, %c0_i32, %arg1 : i32, i32, i32
  }
}

</mosaic_0001>

<llo_original>
// kernel: final_conv.1
$region0: #{final_conv.1}
  #allocation0 [shape = 'u32[]', space=smem, size = 0x4, offset = 0x4, fixed_abs, tag = 'smem constant byte address 0x4 - core index']
  #allocation1 [shape = 'u32[144,128]{1,0:T(1,128)}', space=vmem, size = 0x12000, scoped, tag = 'internal scratch']
  %s0 = inlined_call_operand.vmem [shape: f32[40,32], index: 0, kind: input, shape index: {}]
  %s1 = inlined_call_operand.hbm [shape: f32[2,12,32,128], index: 1, kind: input, shape index: {}]
  %s2 = inlined_call_operand.hbm [shape: f32[2,40,128], index: 2, kind: output, shape index: {}]
  %s3 = sld [smem:[#allocation0]]
  $region45: #{final_conv.1} parent=0
    _
  %s5 = ssub.s32 1, %s3
  %s6 = scalar_select 0, %s5, %s3
  $region1: #{final_conv.1} parent=0
    #allocation2 [shape = 'u8[393216]{0}', space=vmem, size = 0x60000, scoped, tag = 'input window, operand 1']
    #allocation3 [shape = 's32[2]{0}', space=sflag, size = 0x8, scoped, tag = 'scoped memory for final_conv.1']
    #allocation4 [shape = 's32[2]{0}', space=sflag, size = 0x8, scoped, tag = 'scoped memory for final_conv.1']
    #allocation5 [shape = 'u8[40960]{0}', space=vmem, size = 0xa000, scoped, tag = 'output window, operand 0']
    %7 = vsyncpa [#allocation3], 0
    %s8 = scalar_lea.sflag [#allocation3], 1
    %9 = vsyncpa %s8, 0
    %10 = vsyncpa [#allocation4], 0
    %s11 = scalar_lea.sflag [#allocation4], 1
    %12 = vsyncpa %s11, 0
    loop: start=0, step=1, limit=4
    $region2: #{final_conv.1} parent=1 // loop_pre_header
      _
    $region3: #{final_conv.1} parent=1 // loop_header
      %s14 = sphi 0, %s18
      %p15 = scmp.ge.s32.totalorder %s14, 4
      %s21 = sphi 0, %s33
      %s22 = sphi 0, %s29
      %s23 = sphi 0, %s21
      %s24 = sphi 0, %s22
      %s25 = sphi 0, %s23
      %s26 = sphi 0, %s24
      %s34 = sphi 0, %s34
      %s36 = sphi 0, %s34
      %s37 = sphi 0, %s36
      %s51 = sphi 0, %s37
      %s59 = sphi 0, %s61
      %s62 = sphi 0, %s59
      %s63 = sphi 0, %s62
      %s79 = sphi 0, %s63
      %s87 = sphi 0, %s89
      %s90 = sphi 0, %s87
      %s91 = sphi 0, %s90
      %s107 = sphi 0, %s91
    $region4: #{final_conv.1} parent=1 // loop_header_branch
      %17 = sbr.rel (%p15) target = $region8
    $region5: #{final_conv.1} parent=1 // loop_body
      %s19 = ssub.s32 %s14, 1
      %s20 = ssub.s32 %s14, 2
      %s27 = sadd.s32 1, %s22
      %p28 = scmp.ge.s32.totalorder %s27, 1
      %s29 = scalar_select %p28, 0, %s27
      %s30 = sadd.s32 1, %s21
      %s31 = scalar_select %p28, %s30, %s21
      %p32 = scmp.ge.s32.totalorder %s31, 2
      %s33 = scalar_select %p32, 0, %s31
      %s35 = sadd.s32 %s34, 1
      %p38 = scmp.eq.s32.totalorder %s14, 1
      %p39 = scmp.ne.s32.totalorder %s34, %s36
      %p40 = scmp.eq.s32.totalorder %s14, 0
      %p41 = por %p39, %p40
      %p42 = scmp.ne.s32.totalorder %s34, %s36
      %p43 = scmp.eq.s32.totalorder %s19, 1
      %p44 = por %p42, %p43
      %p45 = scmp.ne.s32.totalorder %s36, %s37
      %p46 = scmp.eq.s32.totalorder %s19, 0
      %p47 = por %p45, %p46
      %p48 = scmp.ne.s32.totalorder %s36, %s37
      %p49 = scmp.eq.s32.totalorder %s20, 1
      %p50 = por %p48, %p49
      %p52 = scmp.ne.s32.totalorder %s37, %s51
      %p53 = scmp.eq.s32.totalorder %s20, 0
      %p54 = por %p52, %p53
      %s55 = ssub.s32 %s21, %s33
      %s56 = ssub.s32 %s22, %s29
      %s57 = sor.u32 %s55, %s56
      %p58 = scmp.eq.s32.totalorder %s57, 0
      %s60 = sadd.s32 %s59, 1
      %s61 = scalar_select %p58, %s59, %s60
      %p64 = pneg %p58
      %p65 = scmp.eq.s32.totalorder %s14, 1
      %p66 = por %p64, %p65
      %p67 = scmp.ne.s32.totalorder %s59, %s62
      %p68 = scmp.eq.s32.totalorder %s14, 0
      %p69 = por %p67, %p68
      %p70 = scmp.ne.s32.totalorder %s59, %s62
      %p71 = scmp.eq.s32.totalorder %s19, 1
      %p72 = por %p70, %p71
      %p73 = scmp.ne.s32.totalorder %s62, %s63
      %p74 = scmp.eq.s32.totalorder %s19, 0
      %p75 = por %p73, %p74
      %p76 = scmp.ne.s32.totalorder %s62, %s63
      %p77 = scmp.eq.s32.totalorder %s20, 1
      %p78 = por %p76, %p77
      %p80 = scmp.ne.s32.totalorder %s63, %s79
      %p81 = scmp.eq.s32.totalorder %s20, 0
      %p82 = por %p80, %p81
      %s83 = ssub.s32 %s21, %s33
      %s84 = ssub.s32 %s22, %s29
      %s85 = sor.u32 %s83, %s84
      %p86 = scmp.eq.s32.totalorder %s85, 0
      %s88 = sadd.s32 %s87, 1
      %s89 = scalar_select %p86, %s87, %s88
      %p92 = pneg %p86
      %p93 = scmp.eq.s32.totalorder %s14, 1
      %p94 = por %p92, %p93
      %p95 = scmp.ne.s32.totalorder %s87, %s90
      %p96 = scmp.eq.s32.totalorder %s14, 0
      %p97 = por %p95, %p96
      %p98 = scmp.ne.s32.totalorder %s87, %s90
      %p99 = scmp.eq.s32.totalorder %s19, 1
      %p100 = por %p98, %p99
      %p101 = scmp.ne.s32.totalorder %s90, %s91
      %p102 = scmp.eq.s32.totalorder %s19, 0
      %p103 = por %p101, %p102
      %p104 = scmp.ne.s32.totalorder %s90, %s91
      %p105 = scmp.eq.s32.totalorder %s20, 1
      %p106 = por %p104, %p105
      %p108 = scmp.ne.s32.totalorder %s91, %s107
      %p109 = scmp.eq.s32.totalorder %s20, 0
      %p110 = por %p108, %p109
      %p111 = scmp.le.s32.totalorder 1, %s14
      %p112 = scmp.lt.s32.totalorder %s14, 3
      %p113 = pnand %p111, %p112
      %p114 = pneg %p113
      // Predicated region
      $region9: #{final_conv.1} parent=5 // pred_check
        _
      $region10: #{final_conv.1} parent=5 // pred_check_branch
        %116 = sbr.rel (%p113) target = $region12
      $region11: #{final_conv.1} parent=5 // pred_region
        %s117 = ssub.s32 %s14, 1
        // Predicated region
        $region13: #{final_conv.1} parent=11 // pred_check
          %p118 = pneg %p47
        $region14: #{final_conv.1} parent=11 // pred_check_branch
          %120 = sbr.rel (%p118) target = $region16
        $region15: #{final_conv.1} parent=11 // pred_region
          _
        $region16: #{final_conv.1} parent=11 // pred_fallthru
          _
      $region12: #{final_conv.1} parent=5 // pred_fallthru
        _
      %p121 = scmp.lt.s32.totalorder %s14, 2
      // Predicated region
      $region17: #{final_conv.1} parent=5 // pred_check
        %p122 = pneg %p121
      $region18: #{final_conv.1} parent=5 // pred_check_branch
        %124 = sbr.rel (%p122) target = $region20
      $region19: #{final_conv.1} parent=5 // pred_region
        // Predicated region
        $region21: #{final_conv.1} parent=19 // pred_check
          %p125 = pneg %p69
        $region22: #{final_conv.1} parent=19 // pred_check_branch
          %127 = sbr.rel (%p125) target = $region24
        $region23: #{final_conv.1} parent=19 // pred_region
          %s128 = sand.u32 %s59, 1
          %s129 = scalar_lea.sflag [#allocation3], %s128
          %s130 = sand.u32 %s59, 1
          %s131 = smul.addr %s130, 384
          %s132 = scalar_lea.vmem [#allocation2], %s131
          %s134 = ssub.s32 6144, 6144
          %135 = vsyncadd %s129, %s134
          %s136 = smul.addr %s21, 48
          %s137 = sadd.s32 %s22, %s136
          %s138 = smul.addr %s137, 128
          %s139 = scalar_lea.hbm %s1, %s138
          %s140 = sshll.u32 %s132, 4
          %s141 = int_to_ptr.vmem [resolvable:$true] %s140
          %146 = dma.hbm_to_vmem [thread:$0]  %s139, 6144, %s141, %s129, 128, 128, 8
        $region24: #{final_conv.1} parent=19 // pred_fallthru
          _
      $region20: #{final_conv.1} parent=5 // pred_fallthru
        _
      %p147 = scmp.le.s32.totalorder 1, %s14
      %p148 = scmp.lt.s32.totalorder %s14, 3
      %p149 = pnand %p147, %p148
      %p150 = pneg %p149
      // Predicated region
      $region25: #{final_conv.1} parent=5 // pred_check
        _
      $region26: #{final_conv.1} parent=5 // pred_check_branch
        %152 = sbr.rel (%p149) target = $region28
      $region27: #{final_conv.1} parent=5 // pred_region
        %s153 = ssub.s32 %s14, 1
        %s154 = sand.u32 %s62, 1
        %s155 = scalar_lea.sflag [#allocation3], %s154
        %s156 = sand.u32 %s62, 1
        %s157 = smul.addr %s156, 384
        %s158 = scalar_lea.vmem [#allocation2], %s157
        // Predicated region
        $region29: #{final_conv.1} parent=27 // pred_check
          %p159 = pneg %p75
        $region30: #{final_conv.1} parent=27 // pred_check_branch
          %161 = sbr.rel (%p159) target = $region32
        $region31: #{final_conv.1} parent=27 // pred_region
          %162 = dma.done %s155, 6144
        $region32: #{final_conv.1} parent=27 // pred_fallthru
          _
        %p163 = pneg %p47
        %p164 = pneg %p44
        %s165 = sand.u32 %s62, 1
        %s166 = scalar_lea.sflag [#allocation3], %s165
        %s167 = sand.u32 %s62, 1
        %s168 = smul.addr %s167, 384
        %s169 = scalar_lea.vmem [#allocation2], %s168
        %p170 = pneg %p75
        %p171 = pneg %p72
        %p172 = pneg %p103
        %p173 = pneg %p100
        %s174 = sand.u32 %s90, 1
        %s175 = scalar_lea.sflag [#allocation4], %s174
        %s176 = sand.u32 %s90, 1
        %s177 = smul.addr %s176, 40
        %s178 = scalar_lea.vmem [#allocation5], %s177
        %v179 = vld [vmem:[%s158] sm:$0xff]
        %v180 = vld [vmem:[%s158 + $0x8] sm:$0xff]
        %v181 = vld [vmem:[%s158 + $0x10] sm:$0xff]
        %v182 = vld [vmem:[%s158 + $0x18] sm:$0xff]
        %v183 = vld [vmem:[%s158 + $0x20] sm:$0xff]
        %v184 = vld [vmem:[%s158 + $0x28] sm:$0xff]
        %v185 = vld [vmem:[%s158 + $0x30] sm:$0xff]
        %v186 = vld [vmem:[%s158 + $0x38] sm:$0xff]
        %v187 = vld [vmem:[%s158 + $0x40] sm:$0xff]
        %v188 = vld [vmem:[%s158 + $0x48] sm:$0xff]
        %v189 = vld [vmem:[%s158 + $0x50] sm:$0xff]
        %v190 = vld [vmem:[%s158 + $0x58] sm:$0xff]
        %v191 = vld [vmem:[%s158 + $0x60] sm:$0xff]
        %v192 = vld [vmem:[%s158 + $0x68] sm:$0xff]
        %v193 = vld [vmem:[%s158 + $0x70] sm:$0xff]
        %v194 = vld [vmem:[%s158 + $0x78] sm:$0xff]
        %v195 = vld [vmem:[%s158 + $0x80] sm:$0xff]
        %v196 = vld [vmem:[%s158 + $0x88] sm:$0xff]
        %v197 = vld [vmem:[%s158 + $0x90] sm:$0xff]
        %v198 = vld [vmem:[%s158 + $0x98] sm:$0xff]
        %v199 = vld [vmem:[%s158 + $0xa0] sm:$0xff]
        %v200 = vld [vmem:[%s158 + $0xa8] sm:$0xff]
        %v201 = vld [vmem:[%s158 + $0xb0] sm:$0xff]
        %v202 = vld [vmem:[%s158 + $0xb8] sm:$0xff]
        %v203 = vld [vmem:[%s158 + $0xc0] sm:$0xff]
        %v204 = vld [vmem:[%s158 + $0xc8] sm:$0xff]
        %v205 = vld [vmem:[%s158 + $0xd0] sm:$0xff]
        %v206 = vld [vmem:[%s158 + $0xd8] sm:$0xff]
        %v207 = vld [vmem:[%s158 + $0xe0] sm:$0xff]
        %v208 = vld [vmem:[%s158 + $0xe8] sm:$0xff]
        %v209 = vld [vmem:[%s158 + $0xf0] sm:$0xff]
        %v210 = vld [vmem:[%s158 + $0xf8] sm:$0xff]
        %v211 = vld [vmem:[%s158 + $0x100] sm:$0xff]
        %v212 = vld [vmem:[%s158 + $0x108] sm:$0xff]
        %v213 = vld [vmem:[%s158 + $0x110] sm:$0xff]
        %v214 = vld [vmem:[%s158 + $0x118] sm:$0xff]
        %v215 = vld [vmem:[%s158 + $0x120] sm:$0xff]
        %v216 = vld [vmem:[%s158 + $0x128] sm:$0xff]
        %v217 = vld [vmem:[%s158 + $0x130] sm:$0xff]
        %v218 = vld [vmem:[%s158 + $0x138] sm:$0xff]
        %v219 = vld [vmem:[%s158 + $0x140] sm:$0xff]
        %v220 = vld [vmem:[%s158 + $0x148] sm:$0xff]
        %v221 = vld [vmem:[%s158 + $0x150] sm:$0xff]
        %v222 = vld [vmem:[%s158 + $0x158] sm:$0xff]
        %v223 = vld [vmem:[%s158 + $0x160] sm:$0xff]
        %v224 = vld [vmem:[%s158 + $0x168] sm:$0xff]
        %v225 = vld [vmem:[%s158 + $0x170] sm:$0xff]
        %v226 = vld [vmem:[%s158 + $0x178] sm:$0xff]
        %v227 = vmax.f32 %v179, %v183
        %v228 = vmax.f32 %v227, %v187
        %v229 = vmax.f32 %v228, %v191
        %v230 = vmax.f32 %v229, %v195
        %v231 = vmax.f32 %v230, %v199
        %v232 = vmax.f32 %v231, %v203
        %v233 = vmax.f32 %v232, %v207
        %v234 = vmax.f32 %v233, %v211
        %v235 = vmax.f32 %v234, %v215
        %v236 = vmax.f32 %v235, %v219
        %v237 = vmax.f32 %v236, %v223
        %v238 = vmax.f32 %v180, %v184
        %v239 = vmax.f32 %v238, %v188
        %v240 = vmax.f32 %v239, %v192
        %v241 = vmax.f32 %v240, %v196
        %v242 = vmax.f32 %v241, %v200
        %v243 = vmax.f32 %v242, %v204
        %v244 = vmax.f32 %v243, %v208
        %v245 = vmax.f32 %v244, %v212
        %v246 = vmax.f32 %v245, %v216
        %v247 = vmax.f32 %v246, %v220
        %v248 = vmax.f32 %v247, %v224
        %v249 = vmax.f32 %v181, %v185
        %v250 = vmax.f32 %v249, %v189
        %v251 = vmax.f32 %v250, %v193
        %v252 = vmax.f32 %v251, %v197
        %v253 = vmax.f32 %v252, %v201
        %v254 = vmax.f32 %v253, %v205
        %v255 = vmax.f32 %v254, %v209
        %v256 = vmax.f32 %v255, %v213
        %v257 = vmax.f32 %v256, %v217
        %v258 = vmax.f32 %v257, %v221
        %v259 = vmax.f32 %v258, %v225
        %v260 = vmax.f32 %v182, %v186
        %v261 = vmax.f32 %v260, %v190
        %v262 = vmax.f32 %v261, %v194
        %v263 = vmax.f32 %v262, %v198
        %v264 = vmax.f32 %v263, %v202
        %v265 = vmax.f32 %v264, %v206
        %v266 = vmax.f32 %v265, %v210
        %v267 = vmax.f32 %v266, %v214
        %v268 = vmax.f32 %v267, %v218
        %v269 = vmax.f32 %v268, %v222
        %v270 = vmax.f32 %v269, %v226
        %v271 = vld [vmem:[%s0] sm:$0xff]
        %v272 = vld [vmem:[%s0 + $0x8] sm:$0xff]
        %v273 = vld [vmem:[%s0 + $0x10] sm:$0xff]
        %v274 = vld [vmem:[%s0 + $0x18] sm:$0xff]
        %v275 = vld [vmem:[%s0 + $0x20] sm:$0xff]
        %vm276 = vcmask 261120
        %v278 = vsel %vm276, %v271, 0
        %v281 = vsel %vm276, %v272, 0
        %v284 = vsel %vm276, %v273, 0
        %v287 = vsel %vm276, %v274, 0
        %v290 = vsel %vm276, %v275, 0
        %292 = vmatprep.subr.mxu0 0.0
        %293 = vmatpush1.msra.mxu0 %v237
        %294 = vmatprep.subr.mxu0 0.0
        %295 = vmatpush1.msra.mxu0 %v248
        %296 = vmatprep.subr.mxu0 0.0
        %297 = vmatpush1.msra.mxu0 %v259
        %298 = vmatprep.subr.mxu0 0.0
        %299 = vmatpush1.msra.mxu0 %v270
        %300 = vmatprep.subr.mxu0 0.0
        %301 = vmatpush1.msra.mxu0 0.0
        %302 = vmatprep.subr.mxu0 0.0
        %303 = vmatpush1.msra.mxu0 0.0
        %304 = vmatprep.subr.mxu0 0.0
        %305 = vmatpush1.msra.mxu0 0.0
        %306 = vmatprep.subr.mxu0 0.0
        %307 = vmatpush1.msra.mxu0 0.0
        %308 = vmatprep.subr.mxu0 0.0
        %309 = vmatpush1.msra.mxu0 0.0
        %310 = vmatprep.subr.mxu0 0.0
        %311 = vmatpush1.msra.mxu0 0.0
        %312 = vmatprep.subr.mxu0 0.0
        %313 = vmatpush1.msra.mxu0 0.0
        %314 = vmatprep.subr.mxu0 0.0
        %315 = vmatpush1.msra.mxu0 0.0
        %316 = vmatprep.subr.mxu0 0.0
        %317 = vmatpush1.msra.mxu0 0.0
        %318 = vmatprep.subr.mxu0 0.0
        %319 = vmatpush1.msra.mxu0 0.0
        %320 = vmatprep.subr.mxu0 0.0
        %321 = vmatpush1.msra.mxu0 0.0
        %322 = vmatprep.subr.mxu0 0.0
        %323 = vmatpush1.msra.mxu0 0.0
        %324 = vmatprep.subr.mxu0 0.0
        %325 = vmatpush1.msra.mxu0 0.0
        %326 = vmatprep.subr.mxu0 0.0
        %327 = vmatpush1.msra.mxu0 0.0
        %328 = vmatprep.subr.mxu0 0.0
        %329 = vmatpush1.msra.mxu0 0.0
        %330 = vmatprep.subr.mxu0 0.0
        %331 = vmatpush1.msra.mxu0 0.0
        %332 = vmatprep.subr.mxu0 0.0
        %333 = vmatpush1.msra.mxu0 0.0
        %334 = vmatprep.subr.mxu0 0.0
        %335 = vmatpush1.msra.mxu0 0.0
        %336 = vmatprep.subr.mxu0 0.0
        %337 = vmatpush1.msra.mxu0 0.0
        %338 = vmatprep.subr.mxu0 0.0
        %339 = vmatpush1.msra.mxu0 0.0
        %340 = vmatprep.subr.mxu0 0.0
        %341 = vmatpush1.msra.mxu0 0.0
        %342 = vmatprep.subr.mxu0 0.0
        %343 = vmatpush1.msra.mxu0 0.0
        %344 = vmatprep.subr.mxu0 0.0
        %345 = vmatpush1.msra.mxu0 0.0
        %346 = vmatprep.subr.mxu0 0.0
        %347 = vmatpush1.msra.mxu0 0.0
        %348 = vmatprep.subr.mxu0 0.0
        %349 = vmatpush1.msra.mxu0 0.0
        %350 = vmatprep.subr.mxu0 0.0
        %351 = vmatpush1.msra.mxu0 0.0
        %352 = vmatprep.subr.mxu0 0.0
        %353 = vmatpush1.msra.mxu0 0.0
        %354 = vmatprep.subr.mxu0 0.0
        %355 = vmatpush1.msra.mxu0 0.0
        %356 = vmatprep.mubr.f32.mxu0 0.0
        %357 = vmatmul.mubr.f32.gmra.mrb[0].mxu0 %v278
        %v358 = vpop.f32.mrb[0].mxu0
        %v359 = vadd.f32 0.0, %v358
        %v360 = vpop.f32.mrb[0].mxu0
        %361 = vmatprep.mubr.f32.mxu0 0.0
        %362 = vmatmul.mubr.f32.gmra.mrb[0].mxu0 %v281
        %v363 = vpop.f32.mrb[0].mxu0
        %v364 = vadd.f32 0.0, %v363
        %v365 = vpop.f32.mrb[0].mxu0
        %366 = vmatprep.mubr.f32.mxu0 0.0
        %367 = vmatmul.mubr.f32.gmra.mrb[0].mxu0 %v284
        %v368 = vpop.f32.mrb[0].mxu0
        %v369 = vadd.f32 0.0, %v368
        %v370 = vpop.f32.mrb[0].mxu0
        %371 = vmatprep.mubr.f32.mxu0 0.0
        %372 = vmatmul.mubr.f32.gmra.mrb[0].mxu0 %v287
        %v373 = vpop.f32.mrb[0].mxu0
        %v374 = vadd.f32 0.0, %v373
        %v375 = vpop.f32.mrb[0].mxu0
        %376 = vmatprep.mubr.f32.mxu0 0.0
        %377 = vmatmul.mubr.f32.gmra.mrb[0].mxu0 %v290
        %v378 = vpop.f32.mrb[0].mxu0
        %v379 = vadd.f32 0.0, %v378
        %v380 = vpop.f32.mrb[0].mxu0
        %381 = vdwg.mxu0
        %382 = vst [vmem:[%s178] sm:$0xff] %v359
        %383 = vst [vmem:[%s178 + $0x8] sm:$0xff] %v364
        %384 = vst [vmem:[%s178 + $0x10] sm:$0xff] %v369
        %385 = vst [vmem:[%s178 + $0x18] sm:$0xff] %v374
        %386 = vst [vmem:[%s178 + $0x20] sm:$0xff] %v379
        %s387 = sand.u32 %s90, 1
        %s388 = scalar_lea.sflag [#allocation4], %s387
        %s389 = sand.u32 %s90, 1
        %s390 = smul.addr %s389, 40
        %s391 = scalar_lea.vmem [#allocation5], %s390
        // Predicated region
        $region33: #{final_conv.1} parent=27 // pred_check
          %p392 = pneg %p100
        $region34: #{final_conv.1} parent=27 // pred_check_branch
          %394 = sbr.rel (%p392) target = $region36
        $region35: #{final_conv.1} parent=27 // pred_region
          %s396 = ssub.s32 640, 640
          %397 = vsyncadd %s388, %s396
          %s398 = smul.addr %s23, 5
          %s399 = sadd.s32 %s24, %s398
          %s400 = smul.addr %s399, 128
          %s401 = scalar_lea.hbm %s2, %s400
          %s402 = sshll.u32 %s391, 4
          %s403 = int_to_ptr.vmem [resolvable:$true] %s402
          %408 = dma.vmem_to_hbm [thread:$0]  %s403, 640, %s401, %s388, 128, 128, 8
        $region36: #{final_conv.1} parent=27 // pred_fallthru
          _
      $region28: #{final_conv.1} parent=5 // pred_fallthru
        _
      %p409 = scmp.le.s32.totalorder 2, %s14
      // Predicated region
      $region37: #{final_conv.1} parent=5 // pred_check
        %p410 = pneg %p409
      $region38: #{final_conv.1} parent=5 // pred_check_branch
        %412 = sbr.rel (%p410) target = $region40
      $region39: #{final_conv.1} parent=5 // pred_region
        %s413 = ssub.s32 %s14, 2
        // Predicated region
        $region41: #{final_conv.1} parent=39 // pred_check
          %p414 = pneg %p106
        $region42: #{final_conv.1} parent=39 // pred_check_branch
          %416 = sbr.rel (%p414) target = $region44
        $region43: #{final_conv.1} parent=39 // pred_region
          %s417 = sand.u32 %s91, 1
          %s418 = scalar_lea.sflag [#allocation4], %s417
          %s419 = sand.u32 %s91, 1
          %s420 = smul.addr %s419, 40
          %s421 = scalar_lea.vmem [#allocation5], %s420
          %422 = dma.done %s418, 640
        $region44: #{final_conv.1} parent=39 // pred_fallthru
          _
      $region40: #{final_conv.1} parent=5 // pred_fallthru
        _
    $region6: #{final_conv.1} parent=1 // loop_footer
      %s18 = sadd.s32 1, %s14
    $region7: #{final_conv.1} parent=1 // loop_footer_branch
      %13 = sbr.rel target = $region3
    $region8: #{final_conv.1} parent=1 // loop_exit
      _
    %423 = vsyncpa [#allocation3], 1
    %s424 = scalar_lea.sflag [#allocation3], 1
    %425 = vsyncpa %s424, 1
    %426 = vsyncpa [#allocation4], 1
    %s427 = scalar_lea.sflag [#allocation4], 1
    %428 = vsyncpa %s427, 1

</llo_original>
